<compile_context>
chip_gen: v7x
topology: tpu7x:2x2x1
jax: 0.10.0
libtpu: 0.0.40
codegen_flags: <defaults>
</compile_context>

<pallas_src>
import functools
import math

import jax
import jax.numpy as jnp
from jax import lax
from jax.experimental import pallas as pl
from jax.experimental.pallas import tpu as pltpu

_TWO_PI = 2.0 * math.pi
_HALF_PI = 0.5 * math.pi


def _round_up(n: int, k: int) -> int:
    return ((n + k - 1) // k) * k


def _periodic_activation_kernel(x_ref, p_ref, phase_ref, o_ref, *,
                                num_coefs: int, fold: int, use_mxu: bool):
    # x_ref     : (TMg, fold)        f32 -- fold logical rows per physical row
    # p_ref     : (fold, W) or (1,W) f32 -- params*2*pi, block-diag (MXU) or row (VPU)
    # phase_ref : (1, W)             f32 -- 0 on sin lanes, pi/2 on cos lanes
    # o_ref     : (TMg, W)           f32 -- lane-dense [sin | cos] per 2C group
    two_c = 2 * num_coefs
    if use_mxu:
        # Lane expansion + 2*pi scale in one MXU matmul against the resident
        # block-diagonal params matrix (contraction dim = fold <= 64).
        ang = jnp.dot(x_ref[...], p_ref[...],
                      preferred_element_type=jnp.float32,
                      precision=lax.Precision.HIGHEST)
    else:
        tmg = x_ref.shape[0]
        x = x_ref[...]
        cols = [jnp.broadcast_to(x[:, g:g + 1], (tmg, two_c)) for g in range(fold)]
        x_exp = cols[0] if fold == 1 else jnp.concatenate(cols, axis=-1)
        ang = x_exp * p_ref[...]
    # Single transcendental + single full-width lane-dense store.
    o_ref[...] = jnp.sin(ang + phase_ref[...])


def periodic_activation(x: jax.Array, params: jax.Array) -> jax.Array:
    """x: (..., 1), params: (num_coefs,) -> (..., 2*num_coefs) float32."""
    assert x.shape[-1] == 1, "last dim of x must be 1"
    num_coefs = int(params.shape[0])
    two_c = 2 * num_coefs
    lead_shape = x.shape[:-1]
    m = math.prod(lead_shape)
    out_shape = (*lead_shape, two_c)

    if m == 0:  # degenerate batch
        return jnp.zeros(out_shape, dtype=jnp.float32)

    # Fold G logical rows per physical row so the stored width W is a multiple
    # of 128 lanes (lane-dense, unmasked stores).
    fold = 128 // math.gcd(two_c, 128)
    if fold * two_c > 2048:
        fold = 1  # rare: masked tail stores (perf cliff, still correct)
    w = fold * two_c
    mg = -(-m // fold)  # physical rows needed (cdiv)

    # ~2 MiB f32 output tile; x tile costs tmg*512 B (lane-padded) so the
    # double-buffered footprint stays < 16 MiB (v5e scoped-VMEM default).
    target = max(8, min(4096, ((2 << 20) // (w * 4)) // 8 * 8))

    if mg <= target:
        tmg = _round_up(mg, 8)
        mg_pad = tmg
    elif m % fold == 0 and mg % 8 == 0:
        # Zero row padding -> final reshape/slice is a free view (no HBM copy).
        tmg = math.gcd(mg, target)          # multiple of 8, divides mg exactly
        if tmg < 128:                        # degenerate divisor -> prefer padding
            tmg = target
        mg_pad = _round_up(mg, tmg)
    else:
        tmg = target
        mg_pad = _round_up(mg, tmg)

    # v7x: make sure the "parallel" row axis has >= 2 tiles for the 2 TCs.
    if mg_pad // tmg == 1 and tmg % 16 == 0:
        tmg //= 2
    grid = mg_pad // tmg

    # --- host-side operand layout ------------------------------------------
    xf = x.reshape(-1).astype(jnp.float32)
    pad = mg_pad * fold - m
    if pad:
        xf = jnp.pad(xf, (0, pad))           # zero rows, sliced off below
    x2d = xf.reshape(mg_pad, fold)

    p2 = jnp.tile(params.astype(jnp.float32) * _TWO_PI, 2)      # (2C,) = [P|P]*2pi
    use_mxu = fold >= 8
    if use_mxu:
        # Block-diagonal (fold, W): row g holds p2 at lanes [g*2C, (g+1)*2C).
        p_arr = (jnp.eye(fold, dtype=jnp.float32)[:, :, None]
                 * p2[None, None, :]).reshape(fold, w)
        p_spec = pl.BlockSpec((fold, w), lambda i: (0, 0))
    else:
        p_arr = jnp.tile(p2, fold).reshape(1, w)
        p_spec = pl.BlockSpec((1, w), lambda i: (0, 0))

    phase = jnp.tile(
        jnp.concatenate([jnp.zeros((num_coefs,), jnp.float32),
                         jnp.full((num_coefs,), _HALF_PI, jnp.float32)]),
        fold).reshape(1, w)

    kernel = functools.partial(_periodic_activation_kernel,
                               num_coefs=num_coefs, fold=fold, use_mxu=use_mxu)

    out2d = pl.pallas_call(
        kernel,
        out_shape=jax.ShapeDtypeStruct((mg_pad, w), jnp.float32),
        grid=(grid,),
        in_specs=[
            pl.BlockSpec((tmg, fold), lambda i: (i, 0)),   # x rows, tiled
            p_spec,                                        # params block, resident
            pl.BlockSpec((1, w), lambda i: (0, 0)),        # phase row, resident
        ],
        out_specs=pl.BlockSpec((tmg, w), lambda i: (i, 0)),
        compiler_params=pltpu.CompilerParams(
            dimension_semantics=("parallel",),             # independent row tiles
        ),
    )(x2d, p_arr, phase)

    # (mg_pad, fold*2C) -> (mg_pad*fold, 2C) is a contiguous (free) reshape.
    out = out2d.reshape(mg_pad * fold, two_c)
    if mg_pad * fold != m:                                 # only copy when padded
        out = out[:m]
    # TODO(synk): output is always float32 (matches the f32 nn.Parameter case);
    # the PyTorch module would follow the promoted input dtype.
    return out.reshape(out_shape)


if __name__ == "__main__":
    key = jax.random.PRNGKey(0)
    k1, k2, k3, k4 = jax.random.split(key, 4)

    # --- Config A: num_coefs=32 (2C=64, fold=2) -> VPU lane-expansion path ---
    c_a = 32
    sigma = 0.5
    params_a = jax.random.normal(k1, (c_a,), dtype=jnp.float32) * sigma
    x_a = jax.random.normal(k2, (2, 8, 1), dtype=jnp.float32)
    out_a = jax.block_until_ready(periodic_activation(x_a, params_a))
    ang_a = x_a * params_a * _TWO_PI
    ref_a = jnp.concatenate([jnp.sin(ang_a), jnp.cos(ang_a)], axis=-1)
    assert out_a.shape == (2, 8, 2 * c_a), out_a.shape
    assert jnp.allclose(out_a, ref_a, atol=1e-4, rtol=1e-4), "config A mismatch"

    # --- Config B: num_coefs=4 (2C=8, fold=16, W=128) -> MXU expansion path ---
    c_b = 4
    params_b = jax.random.normal(k3, (c_b,), dtype=jnp.float32) * sigma
    x_b = jax.random.normal(k4, (4, 16, 1), dtype=jnp.float32)
    out_b = jax.block_until_ready(periodic_activation(x_b, params_b))
    ang_b = x_b * params_b * _TWO_PI
    ref_b = jnp.concatenate([jnp.sin(ang_b), jnp.cos(ang_b)], axis=-1)
    assert out_b.shape == (4, 16, 2 * c_b), out_b.shape
    assert jnp.allclose(out_b, ref_b, atol=1e-4, rtol=1e-4), "config B mismatch"

    print("KERNEL_OK")
</pallas_src>

<mosaic_0001>
module attributes {stable_mosaic.version = 11 : i64} {
  func.func @_periodic_activation_kernel(%arg0: i32, %arg1: memref<8x2xf32, #tpu.memory_space<vmem>>, %arg2: memref<1x128xf32, #tpu.memory_space<vmem>>, %arg3: memref<1x128xf32, #tpu.memory_space<vmem>>, %arg4: memref<8x128xf32, #tpu.memory_space<vmem>>) attributes {dimension_semantics = [#tpu.dimension_semantics<parallel>], iteration_bounds = array<i64: 1>, scalar_prefetch = 0 : i64, scratch_operands = 0 : i64, tpu.core_type = #tpu.core_type<tc>, window_params = [{transform_indices = @transform_0, window_bounds = array<i64: 8, 2>}, {pipeline_mode = #tpu.pipeline_mode<synchronous>, transform_indices = @transform_1, window_bounds = array<i64: 1, 128>}, {pipeline_mode = #tpu.pipeline_mode<synchronous>, transform_indices = @transform_2, window_bounds = array<i64: 1, 128>}, {transform_indices = @transform_3, window_bounds = array<i64: 8, 128>}]} {
    %c0 = arith.constant 0 : index
    %c0_0 = arith.constant 0 : index
    %0 = vector.load %arg1[%c0, %c0_0] : memref<8x2xf32, #tpu.memory_space<vmem>>, vector<8x2xf32>
    %1 = vector.extract_strided_slice %0 {offsets = [0, 0], sizes = [8, 1], strides = [1, 1]} : vector<8x2xf32> to vector<8x1xf32>
    %2 = vector.shape_cast %1 : vector<8x1xf32> to vector<8x1xf32>
    %3 = vector.broadcast %2 : vector<8x1xf32> to vector<8x64xf32>
    %4 = vector.extract_strided_slice %0 {offsets = [0, 1], sizes = [8, 1], strides = [1, 1]} : vector<8x2xf32> to vector<8x1xf32>
    %5 = vector.shape_cast %4 : vector<8x1xf32> to vector<8x1xf32>
    %6 = vector.broadcast %5 : vector<8x1xf32> to vector<8x64xf32>
    %7 = tpu.concatenate %3, %6 in 1 : vector<8x64xf32>, vector<8x64xf32> -> vector<8x128xf32>
    %c0_1 = arith.constant 0 : index
    %c0_2 = arith.constant 0 : index
    %8 = vector.load %arg2[%c0_1, %c0_2] : memref<1x128xf32, #tpu.memory_space<vmem>>, vector<1x128xf32>
    %9 = vector.broadcast %8 : vector<1x128xf32> to vector<8x128xf32>
    %10 = arith.mulf %7, %9 : vector<8x128xf32>
    %c0_3 = arith.constant 0 : index
    %c0_4 = arith.constant 0 : index
    %11 = vector.load %arg3[%c0_3, %c0_4] : memref<1x128xf32, #tpu.memory_space<vmem>>, vector<1x128xf32>
    %12 = vector.broadcast %11 : vector<1x128xf32> to vector<8x128xf32>
    %13 = arith.addf %10, %12 : vector<8x128xf32>
    %14 = math.sin %13 : vector<8x128xf32>
    %c0_5 = arith.constant 0 : index
    %c0_6 = arith.constant 0 : index
    %15 = vector.load %arg4[%c0_5, %c0_6] : memref<8x128xf32, #tpu.memory_space<vmem>>, vector<8x128xf32>
    tpu.vector_store %arg4[%c0_5, %c0_6], %14 {strides = array<i32>} : memref<8x128xf32, #tpu.memory_space<vmem>>, vector<8x128xf32>,
    return
  }
  func.func @transform_0(%arg0: i32) -> (i32, i32) {
    %c0_i32 = arith.constant 0 : i32
    %c0_i32_0 = arith.constant 0 : i32
    return %arg0, %c0_i32 : i32, i32
  }
  func.func @transform_1(%arg0: i32) -> (i32, i32) {
    %c0_i32 = arith.constant 0 : i32
    %c0_i32_0 = arith.constant 0 : i32
    %c0_i32_1 = arith.constant 0 : i32
    return %c0_i32, %c0_i32_0 : i32, i32
  }
  func.func @transform_2(%arg0: i32) -> (i32, i32) {
    %c0_i32 = arith.constant 0 : i32
    %c0_i32_0 = arith.constant 0 : i32
    %c0_i32_1 = arith.constant 0 : i32
    return %c0_i32, %c0_i32_0 : i32, i32
  }
  func.func @transform_3(%arg0: i32) -> (i32, i32) {
    %c0_i32 = arith.constant 0 : i32
    %c0_i32_0 = arith.constant 0 : i32
    return %arg0, %c0_i32 : i32, i32
  }
}

</mosaic_0001>

<llo_original>
// kernel: tpu_custom_call.1
$region0: #{tpu_custom_call.1}
  #allocation0 [shape = 'u32[]', space=smem, size = 0x4, offset = 0x4, fixed_abs, tag = 'smem constant byte address 0x4 - core index']
  #allocation1 [shape = 'u32[144,128]{1,0:T(1,128)}', space=vmem, size = 0x12000, scoped, tag = 'internal scratch']
  %s0 = inlined_call_operand.vmem [shape: f32[8,2], index: 0, kind: input, shape index: {}]
  %s1 = inlined_call_operand.vmem [shape: f32[1,128], index: 1, kind: input, shape index: {}]
  %s2 = inlined_call_operand.vmem [shape: f32[1,128], index: 2, kind: input, shape index: {}]
  %s3 = inlined_call_operand.hbm [shape: f32[8,128], index: 3, kind: output, shape index: {}]
  %s4 = sld [smem:[#allocation0]]
  $region22: #{tpu_custom_call.1} parent=0
    _
  %s6 = ssub.s32 1, %s4
  %s7 = scalar_select 0, %s6, %s4
  $region1: #{tpu_custom_call.1} parent=0
    #allocation2 [shape = 'u8[4096]{0}', space=vmem, size = 0x1000, scoped, tag = 'output window, operand 0, single buffered']
    #allocation3 [shape = 's32[1]{0}', space=sflag, size = 0x4, scoped, tag = 'scoped memory for tpu_custom_call.1']
    %8 = vsyncpa [#allocation3], 0
    // Predicated region
    $region2: #{tpu_custom_call.1} parent=1 // pred_check
      _
    $region3: #{tpu_custom_call.1} parent=1 // pred_check_branch
      %10 = sbr.rel (0) target = $region5
    $region4: #{tpu_custom_call.1} parent=1 // pred_region
      _
    $region5: #{tpu_custom_call.1} parent=1 // pred_fallthru
      _
    // Predicated region
    $region6: #{tpu_custom_call.1} parent=1 // pred_check
      _
    $region7: #{tpu_custom_call.1} parent=1 // pred_check_branch
      %12 = sbr.rel (0) target = $region9
    $region8: #{tpu_custom_call.1} parent=1 // pred_region
      _
    $region9: #{tpu_custom_call.1} parent=1 // pred_fallthru
      _
    // Predicated region
    $region10: #{tpu_custom_call.1} parent=1 // pred_check
      _
    $region11: #{tpu_custom_call.1} parent=1 // pred_check_branch
      %14 = sbr.rel (0) target = $region13
    $region12: #{tpu_custom_call.1} parent=1 // pred_region
      _
    $region13: #{tpu_custom_call.1} parent=1 // pred_fallthru
      _
    %v15 = vld [vmem:[%s0] sm:$0xff]
    %17 = vset.pattern.permute.xlu0 0
    %18 = vperm.xlu0 %17, %v15
    %v19 = vpop.permute.xlu0 %18
    %21 = vset.pattern.permute.xlu0 1
    %22 = vperm.xlu0 %21, %v15
    %v23 = vpop.permute.xlu0 %22
    %vm25 = vcmask 523264
    %v26 = vsel %vm25, %v19, %v23
    %v27 = vld [vmem:[%s1] sm:$0x1]
    %v29 = vlaneseq
    %v30 = vshrl.u32 %v29, 7
    %v31 = vsub.s32 0, %v30
    %v32 = vrot.slane %v27, %v31
    %v34 = vmul.f32 %v26, %v32
    %v35 = vld [vmem:[%s2] sm:$0x1]
    %v37 = vlaneseq
    %v38 = vshrl.u32 %v37, 7
    %v39 = vsub.s32 0, %v38
    %v40 = vrot.slane %v35, %v39
    %v42 = vadd.f32 %v34, %v40
    %v43 = vand.u32 2147483647, %v42
    %vm44 = vcmp.le.f32.partialorder %v43, 0.7853982
    %vm45 = vcmp.lt.s32.totalorder %v42, 0
    %v46 = vand.u32 %v42, 2139095040
    %v47 = vshrl.u32 %v46, 23
    %v48 = vsub.s32 %v47, 127
    %v49 = vand.u32 2147483647, %v42
    %v50 = vand.u32 %v49, 8388607
    %v51 = vor.u32 %v50, 8388608
    %v52 = vsub.s32 0, %v51
    %v53 = vadd.s32 %v48, 1
    %vm54 = vcmp.gt.s32.totalorder %v53, 0
    %v55 = vsel %vm54, %v53, 0
    %v56 = vshrl.u32 %v55, 5
    %v57 = vand.u32 %v55, 31
    %v58 = vsub.s32 32, %v57
    %v59 = vshrl.u32 683565275, %v58
    %v60 = vshll.u32 683565275, %v57
    %v61 = vshrl.u32 2475754826, %v58
    %v62 = vor.u32 %v60, %v61
    %v63 = vshll.u32 2475754826, %v57
    %v64 = vshrl.u32 2131351028, %v58
    %v65 = vor.u32 %v63, %v64
    %v66 = vshll.u32 2131351028, %v57
    %v67 = vshrl.u32 2102212464, %v58
    %v68 = vor.u32 %v66, %v67
    %v69 = vshll.u32 2102212464, %v57
    %v70 = vshrl.u32 920167782, %v58
    %v71 = vor.u32 %v69, %v70
    %v72 = vshll.u32 920167782, %v57
    %v73 = vshrl.u32 1326507024, %v58
    %v74 = vor.u32 %v72, %v73
    %vm75 = vcmp.lt.s32.totalorder %v56, 1
    %vm76 = vcmp.lt.s32.totalorder %v56, 2
    %vm77 = vcmp.lt.s32.totalorder %v56, 3
    %vm78 = vcmp.lt.s32.totalorder %v56, 4
    %v79 = vsel %vm75, %v59, %v62
    %v80 = vsel %vm78, %v68, 2102212464
    %v81 = vsel %vm77, %v65, %v80
    %v82 = vsel %vm76, %v79, %v81
    %v83 = vsel %vm75, %v62, %v65
    %v84 = vsel %vm78, %v71, 920167782
    %v85 = vsel %vm77, %v68, %v84
    %v86 = vsel %vm76, %v83, %v85
    %v87 = vsel %vm75, %v65, %v68
    %v88 = vsel %vm78, %v74, 1326507024
    %v89 = vsel %vm77, %v71, %v88
    %v90 = vsel %vm76, %v87, %v89
    %v91 = vshll.u32 %v51, 8
    %v92 = vmul.u32.u64.compose %v91, %v90
    %v93 = vextract.low.u32 %v92
    %v94 = vextract.high.u32 %v92
    %v95 = vmul.u32.u64.compose %v91, %v86
    %v96 = vextract.low.u32 %v95
    %v97 = vextract.high.u32 %v95
    %v98 = vmul.u32 %v91, %v82
    %v99 = vadd.s32 %v94, %v96
    %vm100 = vc.u32 %v94, %v96
    %v101 = vadd.s32 %v97, 1
    %v102 = vsel %vm100, %v101, %v97
    %v103 = vadd.s32 %v98, %v102
    %v104 = vadd.s32 %v103, 536870912
    %v105 = vshrl.u32 %v104, 30
    %v106 = vshll.u32 %v105, 30
    %v107 = vsub.s32 %v103, %v106
    %vm108 = vcmp.lt.s32.totalorder %v107, 0
    %v109 = vsub.s32 0, %v107
    %v110 = vsel %vm108, %v109, %v107
    %v111 = vclz %v110
    %v112 = vsub.s32 %v111, 2
    %vm113 = vcmp.gt.s32.totalorder 0, %v112
    %v114 = vsel %vm113, 0, %v112
    %v115 = vsub.s32 32, %v114
    %v116 = vshll.u32 %v107, %v114
    %v117 = vshrl.u32 %v99, %v115
    %v118 = vor.u32 %v116, %v117
    %v119 = vsub.s32 4294967266, %v114
    %v120 = vadd.s32 %v119, 127
    %v121 = vshll.u32 %v120, 23
    %v122 = vor.u32 4788187, %v121
    %v123 = vand.u32 2147483647, %v122
    %v125 = vcvt.s32.f32 %v118
    %v126 = vmul.f32 %v125, %v123
    %v127 = vxor.u32 %v126, 2147483648
    %v128 = vsel %vm45, %v127, %v126
    %v129 = vsub.s32 4, %v105
    %v130 = vsel %vm45, %v129, %v105
    %v131 = vsel %vm44, %v42, %v128
    %v132 = vsel %vm44, 0, %v130
    %v133 = vcosq.f32.pop %v131
    %v134 = vsinq.f32.pop %v131
    %vm135 = vweird.f32 %v42
    %v136 = vadd.s32 %v132, 3
    %v137 = vand.u32 %v136, 3
    %vm138 = vcmp.lt.s32.totalorder %v137, 2
    %vm139 = vcmp.eq.s32.totalorder %v137, 0
    %v140 = vxor.u32 %v134, 2147483648
    %v141 = vsel %vm139, %v133, %v140
    %vm142 = vcmp.eq.s32.totalorder %v137, 2
    %v143 = vxor.u32 %v133, 2147483648
    %v144 = vsel %vm142, %v143, %v134
    %v145 = vsel %vm138, %v141, %v144
    %v146 = vsel %vm135, nan, %v145
    %147 = vst [vmem:[#allocation2] sm:$0xff] %v146
    // Predicated region
    $region14: #{tpu_custom_call.1} parent=1 // pred_check
      _
    $region15: #{tpu_custom_call.1} parent=1 // pred_check_branch
      %149 = sbr.rel (0) target = $region17
    $region16: #{tpu_custom_call.1} parent=1 // pred_region
      %s151 = ssub.s32 128, 128
      %152 = vsyncadd [#allocation3], %s151
      %s154 = sshll.u32 [#allocation2], 4
      %s155 = int_to_ptr.vmem [resolvable:$true] %s154
      %157 = dma.vmem_to_hbm [thread:$0]  %s155, 128, %s3, [#allocation3]
    $region17: #{tpu_custom_call.1} parent=1 // pred_fallthru
      _
    // Predicated region
    $region18: #{tpu_custom_call.1} parent=1 // pred_check
      _
    $region19: #{tpu_custom_call.1} parent=1 // pred_check_branch
      %159 = sbr.rel (0) target = $region21
    $region20: #{tpu_custom_call.1} parent=1 // pred_region
      %160 = dma.done [#allocation3], 128
    $region21: #{tpu_custom_call.1} parent=1 // pred_fallthru
      _
    %161 = vsyncpa [#allocation3], 1

</llo_original>
